<compile_context>
chip_gen: v5e
topology: v5e:2x2
jax: 0.10.0
libtpu: 0.0.40
codegen_flags: <defaults>
</compile_context>

<pallas_src>
import jax
import jax.numpy as jnp
from jax.experimental import pallas as pl
from jax.experimental.pallas import tpu as pltpu

OUT_LANES = 128  # lane-dense output width; every lane holds the same P(Anomalous)


def meta_classifier_kernel(x_ref,
                           w1_ref, b1_ref,
                           w2_ref, b2_ref,
                           w3_ref, b3_ref,
                           wd_ref, bd_ref,
                           out_ref):
    """One batch tile: 3x (Linear + ReLU) on the MXU + folded Linear(64,2)+softmax."""
    # In-kernel cast: f32 HBM stream -> bf16 MXU operand (no extra wrapper pass).
    h = x_ref[...].astype(jnp.bfloat16)                                  # (TM, F)

    # Layer 1: Linear(F, 256) + ReLU            (Dropout -> identity at inference)
    h = jnp.dot(h, w1_ref[...], preferred_element_type=jnp.float32) + b1_ref[...]
    h = jnp.maximum(h, 0.0).astype(jnp.bfloat16)

    # Layer 2: Linear(256, 128) + ReLU
    h = jnp.dot(h, w2_ref[...], preferred_element_type=jnp.float32) + b2_ref[...]
    h = jnp.maximum(h, 0.0).astype(jnp.bfloat16)

    # Layer 3: Linear(128, 64) + ReLU, zero-padded to 128 output lanes (inert zeros).
    h = jnp.dot(h, w3_ref[...], preferred_element_type=jnp.float32) + b3_ref[...]
    h = jnp.maximum(h, 0.0).astype(jnp.bfloat16)

    # Layer 4 + 2-class softmax folded into a logit difference:
    #   d = logit(anomalous) - logit(normal); every lane carries the same per-row value
    #   (wd's 64-vector is lane-broadcast and zero-row-padded), so the store is
    #   lane-dense and there are no cross-lane (XLU) reductions in the epilogue.
    d = jnp.dot(h, wd_ref[...], preferred_element_type=jnp.float32) + bd_ref[...]
    p_anom = 1.0 / (1.0 + jnp.exp(-d))          # exact sigmoid; EUP cost is hidden
    out_ref[...] = p_anom.astype(out_ref.dtype)


def meta_classifier_forward(x, params, *, block_rows=1024):
    """x: (B, num_nodes*hidden_size) float32. Returns (B, 2) [P(Normal), P(Anomalous)]."""
    B, F = x.shape

    # --- One-time param prep (tiny arrays; bf16 MXU operands, f32 biases) ---------
    w1 = params["w1"].astype(jnp.bfloat16)                  # (F, 256)
    b1 = params["b1"].astype(jnp.float32)                   # (1, 256)
    w2 = params["w2"].astype(jnp.bfloat16)                  # (256, 128)
    b2 = params["b2"].astype(jnp.float32)                   # (1, 128)

    # Layer 3: zero-pad 64 -> 128 output lanes for full MXU width.
    w3_raw = params["w3"].astype(jnp.float32)               # (128, 64)
    b3_raw = params["b3"].astype(jnp.float32)               # (1, 64)
    k3 = w3_raw.shape[1]
    pad3 = OUT_LANES - k3
    w3 = jnp.pad(w3_raw, ((0, 0), (0, pad3))).astype(jnp.bfloat16)   # (128, 128)
    b3 = jnp.pad(b3_raw, ((0, 0), (0, pad3)))                        # (1, 128)

    # Layer 4 folded to a logit difference (computed in f32 to avoid cancellation),
    # lane-broadcast to 128 lanes and zero-row-padded to match the padded h3.
    w4 = params["w4"].astype(jnp.float32)                   # (64, 2)
    b4 = params["b4"].astype(jnp.float32)                   # (1, 2)
    wdiff = w4[:, 1] - w4[:, 0]                             # (64,)
    wd = jnp.pad(jnp.broadcast_to(wdiff[:, None], (k3, OUT_LANES)),
                 ((0, pad3), (0, 0))).astype(jnp.bfloat16)  # (128, 128)
    bd = jnp.full((1, OUT_LANES), b4[0, 1] - b4[0, 0], jnp.float32)

    # --- Batch tiling ---------------------------------------------------------------
    # Tiny batches: one tile equal to the full array (always a legal block shape).
    # Otherwise: at least 2 grid steps (so v7x can shard across its 2 TensorCores),
    # capped at block_rows; tile rows are a multiple of 16 (bf16 sublane tile).
    if B <= 16:
        tm = B
    else:
        half = ((pl.cdiv(B, 2) + 15) // 16) * 16
        tm = min(block_rows, half)
    grid = (pl.cdiv(B, tm),)

    def resident(arr):  # weights/biases: constant block index -> stay VMEM-resident
        nd = arr.ndim
        return pl.BlockSpec(arr.shape, lambda i, _nd=nd: (0,) * _nd)

    out_padded = pl.pallas_call(
        meta_classifier_kernel,
        out_shape=jax.ShapeDtypeStruct((B, OUT_LANES), jnp.bfloat16),
        grid=grid,
        in_specs=[
            pl.BlockSpec((tm, F), lambda i: (i, 0)),          # x: streamed per tile
            resident(w1), resident(b1),
            resident(w2), resident(b2),
            resident(w3), resident(b3),
            resident(wd), resident(bd),
        ],
        out_specs=pl.BlockSpec((tm, OUT_LANES), lambda i: (i, 0)),
        compiler_params=pltpu.CompilerParams(
            dimension_semantics=("parallel",),
            vmem_limit_bytes=32 * 1024 * 1024,
        ),
    )(x, w1, b1, w2, b2, w3, b3, wd, bd)

    # Reconstruct the 2-class distribution from column 0 (all lanes are identical).
    p_anom = out_padded[:, 0:1].astype(jnp.float32)           # (B, 1)
    return jnp.concatenate([1.0 - p_anom, p_anom], axis=-1)   # (B, 2), sums to 1


def init_params(key, input_size):
    """Deterministic parameter init matching nn.Linear shapes (stored as (in, out))."""
    dims = [(input_size, 256), (256, 128), (128, 64), (64, 2)]
    params = {}
    for idx, (fan_in, fan_out) in enumerate(dims, start=1):
        key, kw, kb = jax.random.split(key, 3)
        bound = 1.0 / jnp.sqrt(fan_in)
        params[f"w{idx}"] = jax.random.uniform(
            kw, (fan_in, fan_out), jnp.float32, -bound, bound)
        params[f"b{idx}"] = jax.random.uniform(
            kb, (1, fan_out), jnp.float32, -bound, bound)
    return params


def meta_classifier_ref(x, p):
    """Pure-JAX f32 reference for correctness checking."""
    h = jnp.maximum(x @ p["w1"] + p["b1"], 0.0)
    h = jnp.maximum(h @ p["w2"] + p["b2"], 0.0)
    h = jnp.maximum(h @ p["w3"] + p["b3"], 0.0)
    logits = h @ p["w4"] + p["b4"]
    return jax.nn.softmax(logits, axis=-1)


if __name__ == "__main__":
    num_nodes = 4
    hidden_size = 32
    input_size = num_nodes * hidden_size  # 128
    batch = 2

    key = jax.random.PRNGKey(0)
    key, kx = jax.random.split(key)
    x = jax.random.normal(kx, (batch, input_size), jnp.float32)
    params = init_params(key, input_size)

    out = jax.block_until_ready(meta_classifier_forward(x, params))
    ref = meta_classifier_ref(x, params)
    assert out.shape == (batch, 2)
    assert jnp.allclose(jnp.sum(out, axis=-1), 1.0, atol=1e-5)
    # bf16 MXU inputs + bf16 output storage -> loosened tolerance vs the f32 reference.
    assert jnp.allclose(out, ref, atol=2e-2, rtol=2e-2), float(jnp.max(jnp.abs(out - ref)))

    # Multi-tile + ragged-tail path (grid > 1, last block partially out of bounds).
    key, kx2 = jax.random.split(key)
    x2 = jax.random.normal(kx2, (260, input_size), jnp.float32)
    out2 = jax.block_until_ready(meta_classifier_forward(x2, params, block_rows=128))
    ref2 = meta_classifier_ref(x2, params)
    assert out2.shape == (260, 2)
    assert jnp.allclose(jnp.sum(out2, axis=-1), 1.0, atol=1e-5)
    assert jnp.allclose(out2, ref2, atol=2e-2, rtol=2e-2), float(jnp.max(jnp.abs(out2 - ref2)))

    print("KERNEL_OK")
</pallas_src>

<mosaic_0001>
module attributes {stable_mosaic.version = 11 : i64} {
  func.func @meta_classifier_kernel(%arg0: i32, %arg1: memref<2x128xf32, #tpu.memory_space<vmem>>, %arg2: memref<128x256xbf16, #tpu.memory_space<vmem>>, %arg3: memref<1x256xf32, #tpu.memory_space<vmem>>, %arg4: memref<256x128xbf16, #tpu.memory_space<vmem>>, %arg5: memref<1x128xf32, #tpu.memory_space<vmem>>, %arg6: memref<128x128xbf16, #tpu.memory_space<vmem>>, %arg7: memref<1x128xf32, #tpu.memory_space<vmem>>, %arg8: memref<128x128xbf16, #tpu.memory_space<vmem>>, %arg9: memref<1x128xf32, #tpu.memory_space<vmem>>, %arg10: memref<2x128xbf16, #tpu.memory_space<vmem>>) attributes {dimension_semantics = [#tpu.dimension_semantics<parallel>], iteration_bounds = array<i64: 1>, scalar_prefetch = 0 : i64, scratch_operands = 0 : i64, tpu.core_type = #tpu.core_type<tc>, window_params = [{transform_indices = @transform_0, window_bounds = array<i64: 2, 128>}, {pipeline_mode = #tpu.pipeline_mode<synchronous>, transform_indices = @transform_1, window_bounds = array<i64: 128, 256>}, {pipeline_mode = #tpu.pipeline_mode<synchronous>, transform_indices = @transform_2, window_bounds = array<i64: 1, 256>}, {pipeline_mode = #tpu.pipeline_mode<synchronous>, transform_indices = @transform_3, window_bounds = array<i64: 256, 128>}, {pipeline_mode = #tpu.pipeline_mode<synchronous>, transform_indices = @transform_4, window_bounds = array<i64: 1, 128>}, {pipeline_mode = #tpu.pipeline_mode<synchronous>, transform_indices = @transform_5, window_bounds = array<i64: 128, 128>}, {pipeline_mode = #tpu.pipeline_mode<synchronous>, transform_indices = @transform_6, window_bounds = array<i64: 1, 128>}, {pipeline_mode = #tpu.pipeline_mode<synchronous>, transform_indices = @transform_7, window_bounds = array<i64: 128, 128>}, {pipeline_mode = #tpu.pipeline_mode<synchronous>, transform_indices = @transform_8, window_bounds = array<i64: 1, 128>}, {transform_indices = @transform_9, window_bounds = array<i64: 2, 128>}]} {
    %c0 = arith.constant 0 : index
    %c0_0 = arith.constant 0 : index
    %0 = vector.load %arg1[%c0, %c0_0] : memref<2x128xf32, #tpu.memory_space<vmem>>, vector<2x128xf32>
    %1 = arith.truncf %0 : vector<2x128xf32> to vector<2x128xbf16>
    %c0_1 = arith.constant 0 : index
    %c0_2 = arith.constant 0 : index
    %2 = vector.load %arg2[%c0_1, %c0_2] : memref<128x256xbf16, #tpu.memory_space<vmem>>, vector<128x256xbf16>
    %cst = arith.constant dense<0.000000e+00> : vector<2x256xf32>
    %3 = tpu.matmul %1, %2, %cst {dimension_numbers = #tpu.dot_dimension_numbers<[1], [0], [0], [1], [0, 0, 1, 1], [], []>} : vector<2x128xbf16>, vector<128x256xbf16>, vector<2x256xf32> -> vector<2x256xf32>
    %c0_3 = arith.constant 0 : index
    %c0_4 = arith.constant 0 : index
    %4 = vector.load %arg3[%c0_3, %c0_4] : memref<1x256xf32, #tpu.memory_space<vmem>>, vector<1x256xf32>
    %5 = vector.broadcast %4 : vector<1x256xf32> to vector<2x256xf32>
    %6 = arith.addf %3, %5 : vector<2x256xf32>
    %cst_5 = arith.constant 0.000000e+00 : f32
    %7 = vector.broadcast %cst_5 : f32 to vector<2x256xf32>
    %8 = arith.maximumf %6, %7 : vector<2x256xf32>
    %9 = arith.truncf %8 : vector<2x256xf32> to vector<2x256xbf16>
    %c0_6 = arith.constant 0 : index
    %c0_7 = arith.constant 0 : index
    %10 = vector.load %arg4[%c0_6, %c0_7] : memref<256x128xbf16, #tpu.memory_space<vmem>>, vector<256x128xbf16>
    %cst_8 = arith.constant dense<0.000000e+00> : vector<2x128xf32>
    %11 = tpu.matmul %9, %10, %cst_8 {dimension_numbers = #tpu.dot_dimension_numbers<[1], [0], [0], [1], [0, 0, 1, 1], [], []>} : vector<2x256xbf16>, vector<256x128xbf16>, vector<2x128xf32> -> vector<2x128xf32>
    %c0_9 = arith.constant 0 : index
    %c0_10 = arith.constant 0 : index
    %12 = vector.load %arg5[%c0_9, %c0_10] : memref<1x128xf32, #tpu.memory_space<vmem>>, vector<1x128xf32>
    %13 = vector.broadcast %12 : vector<1x128xf32> to vector<2x128xf32>
    %14 = arith.addf %11, %13 : vector<2x128xf32>
    %cst_11 = arith.constant 0.000000e+00 : f32
    %15 = vector.broadcast %cst_11 : f32 to vector<2x128xf32>
    %16 = arith.maximumf %14, %15 : vector<2x128xf32>
    %17 = arith.truncf %16 : vector<2x128xf32> to vector<2x128xbf16>
    %c0_12 = arith.constant 0 : index
    %c0_13 = arith.constant 0 : index
    %18 = vector.load %arg6[%c0_12, %c0_13] : memref<128x128xbf16, #tpu.memory_space<vmem>>, vector<128x128xbf16>
    %cst_14 = arith.constant dense<0.000000e+00> : vector<2x128xf32>
    %19 = tpu.matmul %17, %18, %cst_14 {dimension_numbers = #tpu.dot_dimension_numbers<[1], [0], [0], [1], [0, 0, 1, 1], [], []>} : vector<2x128xbf16>, vector<128x128xbf16>, vector<2x128xf32> -> vector<2x128xf32>
    %c0_15 = arith.constant 0 : index
    %c0_16 = arith.constant 0 : index
    %20 = vector.load %arg7[%c0_15, %c0_16] : memref<1x128xf32, #tpu.memory_space<vmem>>, vector<1x128xf32>
    %21 = vector.broadcast %20 : vector<1x128xf32> to vector<2x128xf32>
    %22 = arith.addf %19, %21 : vector<2x128xf32>
    %cst_17 = arith.constant 0.000000e+00 : f32
    %23 = vector.broadcast %cst_17 : f32 to vector<2x128xf32>
    %24 = arith.maximumf %22, %23 : vector<2x128xf32>
    %25 = arith.truncf %24 : vector<2x128xf32> to vector<2x128xbf16>
    %c0_18 = arith.constant 0 : index
    %c0_19 = arith.constant 0 : index
    %26 = vector.load %arg8[%c0_18, %c0_19] : memref<128x128xbf16, #tpu.memory_space<vmem>>, vector<128x128xbf16>
    %cst_20 = arith.constant dense<0.000000e+00> : vector<2x128xf32>
    %27 = tpu.matmul %25, %26, %cst_20 {dimension_numbers = #tpu.dot_dimension_numbers<[1], [0], [0], [1], [0, 0, 1, 1], [], []>} : vector<2x128xbf16>, vector<128x128xbf16>, vector<2x128xf32> -> vector<2x128xf32>
    %c0_21 = arith.constant 0 : index
    %c0_22 = arith.constant 0 : index
    %28 = vector.load %arg9[%c0_21, %c0_22] : memref<1x128xf32, #tpu.memory_space<vmem>>, vector<1x128xf32>
    %29 = vector.broadcast %28 : vector<1x128xf32> to vector<2x128xf32>
    %30 = arith.addf %27, %29 : vector<2x128xf32>
    %cst_23 = arith.constant 0.000000e+00 : f32
    %31 = vector.broadcast %cst_23 : f32 to vector<2x128xf32>
    %32 = arith.subf %31, %30 : vector<2x128xf32>
    %33 = math.exp %32 : vector<2x128xf32>
    %cst_24 = arith.constant 1.000000e+00 : f32
    %34 = vector.broadcast %cst_24 : f32 to vector<2x128xf32>
    %35 = arith.addf %34, %33 : vector<2x128xf32>
    %cst_25 = arith.constant 1.000000e+00 : f32
    %36 = vector.broadcast %cst_25 : f32 to vector<2x128xf32>
    %37 = arith.divf %36, %35 : vector<2x128xf32>
    %38 = arith.truncf %37 : vector<2x128xf32> to vector<2x128xbf16>
    %c0_26 = arith.constant 0 : index
    %c0_27 = arith.constant 0 : index
    %39 = vector.load %arg10[%c0_26, %c0_27] : memref<2x128xbf16, #tpu.memory_space<vmem>>, vector<2x128xbf16>
    tpu.vector_store %arg10[%c0_26, %c0_27], %38 {strides = array<i32>} : memref<2x128xbf16, #tpu.memory_space<vmem>>, vector<2x128xbf16>,
    return
  }
  func.func @transform_0(%arg0: i32) -> (i32, i32) {
    %c0_i32 = arith.constant 0 : i32
    %c0_i32_0 = arith.constant 0 : i32
    return %arg0, %c0_i32 : i32, i32
  }
  func.func @transform_1(%arg0: i32) -> (i32, i32) {
    %c0_i32 = arith.constant 0 : i32
    %c0_i32_0 = arith.constant 0 : i32
    %c0_i32_1 = arith.constant 0 : i32
    return %c0_i32, %c0_i32_0 : i32, i32
  }
  func.func @transform_2(%arg0: i32) -> (i32, i32) {
    %c0_i32 = arith.constant 0 : i32
    %c0_i32_0 = arith.constant 0 : i32
    %c0_i32_1 = arith.constant 0 : i32
    return %c0_i32, %c0_i32_0 : i32, i32
  }
  func.func @transform_3(%arg0: i32) -> (i32, i32) {
    %c0_i32 = arith.constant 0 : i32
    %c0_i32_0 = arith.constant 0 : i32
    %c0_i32_1 = arith.constant 0 : i32
    return %c0_i32, %c0_i32_0 : i32, i32
  }
  func.func @transform_4(%arg0: i32) -> (i32, i32) {
    %c0_i32 = arith.constant 0 : i32
    %c0_i32_0 = arith.constant 0 : i32
    %c0_i32_1 = arith.constant 0 : i32
    return %c0_i32, %c0_i32_0 : i32, i32
  }
  func.func @transform_5(%arg0: i32) -> (i32, i32) {
    %c0_i32 = arith.constant 0 : i32
    %c0_i32_0 = arith.constant 0 : i32
    %c0_i32_1 = arith.constant 0 : i32
    return %c0_i32, %c0_i32_0 : i32, i32
  }
  func.func @transform_6(%arg0: i32) -> (i32, i32) {
    %c0_i32 = arith.constant 0 : i32
    %c0_i32_0 = arith.constant 0 : i32
    %c0_i32_1 = arith.constant 0 : i32
    return %c0_i32, %c0_i32_0 : i32, i32
  }
  func.func @transform_7(%arg0: i32) -> (i32, i32) {
    %c0_i32 = arith.constant 0 : i32
    %c0_i32_0 = arith.constant 0 : i32
    %c0_i32_1 = arith.constant 0 : i32
    return %c0_i32, %c0_i32_0 : i32, i32
  }
  func.func @transform_8(%arg0: i32) -> (i32, i32) {
    %c0_i32 = arith.constant 0 : i32
    %c0_i32_0 = arith.constant 0 : i32
    %c0_i32_1 = arith.constant 0 : i32
    return %c0_i32, %c0_i32_0 : i32, i32
  }
  func.func @transform_9(%arg0: i32) -> (i32, i32) {
    %c0_i32 = arith.constant 0 : i32
    %c0_i32_0 = arith.constant 0 : i32
    return %arg0, %c0_i32 : i32, i32
  }
}

</mosaic_0001>

<llo_original>
// kernel: tpu_custom_call.1
$region0: #{tpu_custom_call.1}
  #allocation0 [shape = 'u32[]', space=smem, size = 0x4, offset = 0x4, fixed_abs, tag = 'smem constant byte address 0x4 - core index']
  #allocation1 [shape = 'u32[72,128]{1,0:T(1,128)}', space=vmem, size = 0x9000, scoped, tag = 'internal scratch']
  %s0 = inlined_call_operand.hbm [shape: f32[2,128], index: 0, kind: input, shape index: {}]
  %s1 = inlined_call_operand.hbm [shape: bf16[128,256], index: 1, kind: input, shape index: {}]
  %s2 = inlined_call_operand.hbm [shape: f32[1,256], index: 2, kind: input, shape index: {}]
  %s3 = inlined_call_operand.hbm [shape: bf16[256,128], index: 3, kind: input, shape index: {}]
  %s4 = inlined_call_operand.vmem [shape: f32[1,128], index: 4, kind: input, shape index: {}]
  %s5 = inlined_call_operand.hbm [shape: bf16[128,128], index: 5, kind: input, shape index: {}]
  %s6 = inlined_call_operand.vmem [shape: f32[1,128], index: 6, kind: input, shape index: {}]
  %s7 = inlined_call_operand.hbm [shape: bf16[128,128], index: 7, kind: input, shape index: {}]
  %s8 = inlined_call_operand.vmem [shape: f32[1,128], index: 8, kind: input, shape index: {}]
  %s9 = inlined_call_operand.hbm [shape: bf16[2,128], index: 9, kind: output, shape index: {}]
  %s10 = sld [smem:[#allocation0]]
  $region70: #{tpu_custom_call.1} parent=0
    _
  %s12 = ssub.s32 1, %s10
  %s13 = scalar_select 0, %s12, %s10
  $region1: #{tpu_custom_call.1} parent=0
    #allocation2 [shape = 'u8[1024]{0}', space=vmem, size = 0x400, scoped, tag = 'input window, operand 0, single buffered']
    #allocation3 [shape = 's32[1]{0}', space=sflag, size = 0x4, scoped, tag = 'scoped memory for tpu_custom_call.1']
    #allocation4 [shape = 's32[1]{0}', space=sflag, size = 0x4, scoped, tag = 'scoped memory for tpu_custom_call.1']
    #allocation5 [shape = 'u8[65536]{0}', space=vmem, size = 0x10000, scoped, tag = 'input window, operand 1, single buffered']
    #allocation6 [shape = 's32[1]{0}', space=sflag, size = 0x4, scoped, tag = 'scoped memory for tpu_custom_call.1']
    #allocation7 [shape = 'u8[1024]{0}', space=vmem, size = 0x400, scoped, tag = 'input window, operand 2, single buffered']
    #allocation8 [shape = 'u8[65536]{0}', space=vmem, size = 0x10000, scoped, tag = 'input window, operand 3, single buffered']
    #allocation9 [shape = 's32[1]{0}', space=sflag, size = 0x4, scoped, tag = 'scoped memory for tpu_custom_call.1']
    #allocation10 [shape = 'u8[32768]{0}', space=vmem, size = 0x8000, scoped, tag = 'input window, operand 5, single buffered']
    #allocation11 [shape = 'u8[32768]{0}', space=vmem, size = 0x8000, scoped, tag = 'input window, operand 7, single buffered']
    #allocation12 [shape = 's32[1]{0}', space=sflag, size = 0x4, scoped, tag = 'scoped memory for tpu_custom_call.1']
    #allocation13 [shape = 'u8[512]{0}', space=vmem, size = 0x400, scoped, tag = 'output window, operand 0, single buffered']
    %14 = vsyncpa [#allocation3], 0
    %15 = vsyncpa [#allocation6], 0
    %16 = vsyncpa [#allocation9], 0
    %17 = vsyncpa [#allocation12], 0
    %18 = vsyncpa [#allocation4], 0
    // Predicated region
    $region2: #{tpu_custom_call.1} parent=1 // pred_check
      _
    $region3: #{tpu_custom_call.1} parent=1 // pred_check_branch
      %20 = sbr.rel (0) target = $region5
    $region4: #{tpu_custom_call.1} parent=1 // pred_region
      %22 = vsyncadd [#allocation3], 0
      %s24 = sshll.u32 %s0, 4
      %s25 = int_to_ptr.hbm [resolvable:$true] %s24
      %s26 = sshll.u32 [#allocation2], 4
      %s27 = int_to_ptr.vmem [resolvable:$true] %s26
      %29 = dma.hbm_to_vmem [thread:$0]  %s25, 32, %s27, [#allocation3]
    $region5: #{tpu_custom_call.1} parent=1 // pred_fallthru
      _
    // Predicated region
    $region6: #{tpu_custom_call.1} parent=1 // pred_check
      _
    $region7: #{tpu_custom_call.1} parent=1 // pred_check_branch
      %31 = sbr.rel (0) target = $region9
    $region8: #{tpu_custom_call.1} parent=1 // pred_region
      %33 = vsyncadd [#allocation6], 0
      %s34 = sshll.u32 %s1, 4
      %s35 = int_to_ptr.hbm [resolvable:$true] %s34
      %s36 = sshll.u32 [#allocation5], 4
      %s37 = int_to_ptr.vmem [resolvable:$true] %s36
      %42 = dma.hbm_to_vmem [thread:$0]  %s35, 2048, %s37, [#allocation6], 128, 128, 8
    $region9: #{tpu_custom_call.1} parent=1 // pred_fallthru
      _
    // Predicated region
    $region10: #{tpu_custom_call.1} parent=1 // pred_check
      _
    $region11: #{tpu_custom_call.1} parent=1 // pred_check_branch
      %44 = sbr.rel (0) target = $region13
    $region12: #{tpu_custom_call.1} parent=1 // pred_region
      %46 = vsyncadd [#allocation6], 0
      %s48 = sshll.u32 %s2, 4
      %s49 = int_to_ptr.hbm [resolvable:$true] %s48
      %s50 = sshll.u32 [#allocation7], 4
      %s51 = int_to_ptr.vmem [resolvable:$true] %s50
      %53 = dma.hbm_to_vmem [thread:$0]  %s49, 32, %s51, [#allocation6]
    $region13: #{tpu_custom_call.1} parent=1 // pred_fallthru
      _
    // Predicated region
    $region14: #{tpu_custom_call.1} parent=1 // pred_check
      _
    $region15: #{tpu_custom_call.1} parent=1 // pred_check_branch
      %55 = sbr.rel (0) target = $region17
    $region16: #{tpu_custom_call.1} parent=1 // pred_region
      %57 = vsyncadd [#allocation9], 0
      %s58 = sshll.u32 %s3, 4
      %s59 = int_to_ptr.hbm [resolvable:$true] %s58
      %s60 = sshll.u32 [#allocation8], 4
      %s61 = int_to_ptr.vmem [resolvable:$true] %s60
      %66 = dma.hbm_to_vmem [thread:$0]  %s59, 2048, %s61, [#allocation9], 64, 64, 4
    $region17: #{tpu_custom_call.1} parent=1 // pred_fallthru
      _
    // Predicated region
    $region18: #{tpu_custom_call.1} parent=1 // pred_check
      _
    $region19: #{tpu_custom_call.1} parent=1 // pred_check_branch
      %68 = sbr.rel (0) target = $region21
    $region20: #{tpu_custom_call.1} parent=1 // pred_region
      _
    $region21: #{tpu_custom_call.1} parent=1 // pred_fallthru
      _
    // Predicated region
    $region22: #{tpu_custom_call.1} parent=1 // pred_check
      _
    $region23: #{tpu_custom_call.1} parent=1 // pred_check_branch
      %70 = sbr.rel (0) target = $region25
    $region24: #{tpu_custom_call.1} parent=1 // pred_region
      %72 = vsyncadd [#allocation9], 0
      %s73 = sshll.u32 %s5, 4
      %s74 = int_to_ptr.hbm [resolvable:$true] %s73
      %s75 = sshll.u32 [#allocation10], 4
      %s76 = int_to_ptr.vmem [resolvable:$true] %s75
      %81 = dma.hbm_to_vmem [thread:$0]  %s74, 1024, %s76, [#allocation9], 64, 64, 4
    $region25: #{tpu_custom_call.1} parent=1 // pred_fallthru
      _
    // Predicated region
    $region26: #{tpu_custom_call.1} parent=1 // pred_check
      _
    $region27: #{tpu_custom_call.1} parent=1 // pred_check_branch
      %83 = sbr.rel (0) target = $region29
    $region28: #{tpu_custom_call.1} parent=1 // pred_region
      _
    $region29: #{tpu_custom_call.1} parent=1 // pred_fallthru
      _
    // Predicated region
    $region30: #{tpu_custom_call.1} parent=1 // pred_check
      _
    $region31: #{tpu_custom_call.1} parent=1 // pred_check_branch
      %85 = sbr.rel (0) target = $region33
    $region32: #{tpu_custom_call.1} parent=1 // pred_region
      %87 = vsyncadd [#allocation12], 0
      %s88 = sshll.u32 %s7, 4
      %s89 = int_to_ptr.hbm [resolvable:$true] %s88
      %s90 = sshll.u32 [#allocation11], 4
      %s91 = int_to_ptr.vmem [resolvable:$true] %s90
      %96 = dma.hbm_to_vmem [thread:$0]  %s89, 1024, %s91, [#allocation12], 64, 64, 4
    $region33: #{tpu_custom_call.1} parent=1 // pred_fallthru
      _
    // Predicated region
    $region34: #{tpu_custom_call.1} parent=1 // pred_check
      _
    $region35: #{tpu_custom_call.1} parent=1 // pred_check_branch
      %98 = sbr.rel (0) target = $region37
    $region36: #{tpu_custom_call.1} parent=1 // pred_region
      _
    $region37: #{tpu_custom_call.1} parent=1 // pred_fallthru
      _
    // Predicated region
    $region38: #{tpu_custom_call.1} parent=1 // pred_check
      _
    $region39: #{tpu_custom_call.1} parent=1 // pred_check_branch
      %100 = sbr.rel (0) target = $region41
    $region40: #{tpu_custom_call.1} parent=1 // pred_region
      %102 = dma.done [#allocation3], 32
    $region41: #{tpu_custom_call.1} parent=1 // pred_fallthru
      _
    // Predicated region
    $region42: #{tpu_custom_call.1} parent=1 // pred_check
      _
    $region43: #{tpu_custom_call.1} parent=1 // pred_check_branch
      %104 = sbr.rel (0) target = $region45
    $region44: #{tpu_custom_call.1} parent=1 // pred_region
      %106 = dma.done [#allocation6], 2048
    $region45: #{tpu_custom_call.1} parent=1 // pred_fallthru
      _
    // Predicated region
    $region46: #{tpu_custom_call.1} parent=1 // pred_check
      _
    $region47: #{tpu_custom_call.1} parent=1 // pred_check_branch
      %108 = sbr.rel (0) target = $region49
    $region48: #{tpu_custom_call.1} parent=1 // pred_region
      %110 = dma.done [#allocation6], 32
    $region49: #{tpu_custom_call.1} parent=1 // pred_fallthru
      _
    // Predicated region
    $region50: #{tpu_custom_call.1} parent=1 // pred_check
      _
    $region51: #{tpu_custom_call.1} parent=1 // pred_check_branch
      %112 = sbr.rel (0) target = $region53
    $region52: #{tpu_custom_call.1} parent=1 // pred_region
      %114 = dma.done [#allocation9], 2048
    $region53: #{tpu_custom_call.1} parent=1 // pred_fallthru
      _
    // Predicated region
    $region54: #{tpu_custom_call.1} parent=1 // pred_check
      _
    $region55: #{tpu_custom_call.1} parent=1 // pred_check_branch
      %116 = sbr.rel (0) target = $region57
    $region56: #{tpu_custom_call.1} parent=1 // pred_region
      %118 = dma.done [#allocation9], 1024
    $region57: #{tpu_custom_call.1} parent=1 // pred_fallthru
      _
    // Predicated region
    $region58: #{tpu_custom_call.1} parent=1 // pred_check
      _
    $region59: #{tpu_custom_call.1} parent=1 // pred_check_branch
      %120 = sbr.rel (0) target = $region61
    $region60: #{tpu_custom_call.1} parent=1 // pred_region
      %122 = dma.done [#allocation12], 1024
    $region61: #{tpu_custom_call.1} parent=1 // pred_fallthru
      _
    %v123 = vld [vmem:[#allocation2] sm:$0x3]
    %v124 = vpack.c.bf16 %v123, %v123
    %v125 = vld [vmem:[#allocation5] sm:$0xff]
    %v126 = vld [vmem:[#allocation5 + $0x8] sm:$0xff]
    %v127 = vld [vmem:[#allocation5 + $0x10] sm:$0xff]
    %v128 = vld [vmem:[#allocation5 + $0x18] sm:$0xff]
    %v129 = vld [vmem:[#allocation5 + $0x20] sm:$0xff]
    %v130 = vld [vmem:[#allocation5 + $0x28] sm:$0xff]
    %v131 = vld [vmem:[#allocation5 + $0x30] sm:$0xff]
    %v132 = vld [vmem:[#allocation5 + $0x38] sm:$0xff]
    %v133 = vld [vmem:[#allocation5 + $0x40] sm:$0xff]
    %v134 = vld [vmem:[#allocation5 + $0x48] sm:$0xff]
    %v135 = vld [vmem:[#allocation5 + $0x50] sm:$0xff]
    %v136 = vld [vmem:[#allocation5 + $0x58] sm:$0xff]
    %v137 = vld [vmem:[#allocation5 + $0x60] sm:$0xff]
    %v138 = vld [vmem:[#allocation5 + $0x68] sm:$0xff]
    %v139 = vld [vmem:[#allocation5 + $0x70] sm:$0xff]
    %v140 = vld [vmem:[#allocation5 + $0x78] sm:$0xff]
    %v141 = vld [vmem:[#allocation7] sm:$0x3]
    %v143 = vperm.slane %v141, 0
    %v144 = vperm.slane %v141, 1
    %v163 = vunpack.c.l.b16 %v125
    %v164 = vunpack.c.h.b16 %v125
    %v165 = vunpack.c.l.b16 %v126
    %v166 = vunpack.c.h.b16 %v126
    %v167 = vunpack.c.l.b16 %v127
    %v168 = vunpack.c.h.b16 %v127
    %v169 = vunpack.c.l.b16 %v128
    %v170 = vunpack.c.h.b16 %v128
    %v171 = vunpack.c.l.b16 %v129
    %v172 = vunpack.c.h.b16 %v129
    %v173 = vunpack.c.l.b16 %v130
    %v174 = vunpack.c.h.b16 %v130
    %v175 = vunpack.c.l.b16 %v131
    %v176 = vunpack.c.h.b16 %v131
    %v177 = vunpack.c.l.b16 %v132
    %v178 = vunpack.c.h.b16 %v132
    %v179 = vunpack.c.l.b16 %v133
    %v180 = vunpack.c.h.b16 %v133
    %v181 = vunpack.c.l.b16 %v134
    %v182 = vunpack.c.h.b16 %v134
    %v183 = vunpack.c.l.b16 %v135
    %v184 = vunpack.c.h.b16 %v135
    %v185 = vunpack.c.l.b16 %v136
    %v186 = vunpack.c.h.b16 %v136
    %v187 = vunpack.c.l.b16 %v137
    %v188 = vunpack.c.h.b16 %v137
    %v189 = vunpack.c.l.b16 %v138
    %v190 = vunpack.c.h.b16 %v138
    %v191 = vunpack.c.l.b16 %v139
    %v192 = vunpack.c.h.b16 %v139
    %v193 = vunpack.c.l.b16 %v140
    %v194 = vunpack.c.h.b16 %v140
    %v195 = vpack.c.b16 %v165, %v163
    %v196 = vpack.c.b16 %v166, %v164
    %v197 = vpack.c.b16 %v169, %v167
    %v198 = vpack.c.b16 %v170, %v168
    %v199 = vpack.c.b16 %v173, %v171
    %v200 = vpack.c.b16 %v174, %v172
    %v201 = vpack.c.b16 %v177, %v175
    %v202 = vpack.c.b16 %v178, %v176
    %v203 = vpack.c.b16 %v181, %v179
    %v204 = vpack.c.b16 %v182, %v180
    %v205 = vpack.c.b16 %v185, %v183
    %v206 = vpack.c.b16 %v186, %v184
    %v207 = vpack.c.b16 %v189, %v187
    %v208 = vpack.c.b16 %v190, %v188
    %v209 = vpack.c.b16 %v193, %v191
    %v210 = vpack.c.b16 %v194, %v192
    %227 = vmatpush.bf16.msra.mxu0 %v209
    %228 = vmatpush.bf16.msra.mxu0 %v207
    %229 = vmatpush.bf16.msra.mxu0 %v205
    %230 = vmatpush.bf16.msra.mxu0 %v203
    %231 = vmatpush.bf16.msra.mxu0 %v201
    %232 = vmatpush.bf16.msra.mxu0 %v199
    %233 = vmatpush.bf16.msra.mxu0 %v197
    %234 = vmatpush.bf16.msra.mxu0 %v195
    %235 = vmatmul.bf16.gmra.mxu0 %v124
    %v236 = vpop.f32.mrf.mxu0
    %v237 = vadd.f32 %v143, %v236
    %v238 = vpop.f32.mrf.mxu0
    %239 = vdwg.mxu0
    %240 = vmatpush.bf16.msra.mxu0 %v210
    %241 = vmatpush.bf16.msra.mxu0 %v208
    %242 = vmatpush.bf16.msra.mxu0 %v206
    %243 = vmatpush.bf16.msra.mxu0 %v204
    %244 = vmatpush.bf16.msra.mxu0 %v202
    %245 = vmatpush.bf16.msra.mxu0 %v200
    %246 = vmatpush.bf16.msra.mxu0 %v198
    %247 = vmatpush.bf16.msra.mxu0 %v196
    %248 = vmatmul.bf16.gmra.mxu0 %v124
    %v249 = vpop.f32.mrf.mxu0
    %v250 = vadd.f32 %v144, %v249
    %v251 = vpop.f32.mrf.mxu0
    %252 = vdwg.mxu0
    %v253 = vmax.f32 %v237, 0.0
    %v254 = vmax.f32 %v250, 0.0
    %v255 = vpack.c.bf16 %v253, %v253
    %v256 = vpack.c.bf16 %v254, %v254
    %v257 = vld [vmem:[#allocation8] sm:$0xf]
    %v258 = vld [vmem:[#allocation8 + $0x4] sm:$0xf]
    %v259 = vld [vmem:[#allocation8 + $0x8] sm:$0xf]
    %v260 = vld [vmem:[#allocation8 + $0xc] sm:$0xf]
    %v261 = vld [vmem:[#allocation8 + $0x10] sm:$0xf]
    %v262 = vld [vmem:[#allocation8 + $0x14] sm:$0xf]
    %v263 = vld [vmem:[#allocation8 + $0x18] sm:$0xf]
    %v264 = vld [vmem:[#allocation8 + $0x1c] sm:$0xf]
    %v265 = vld [vmem:[#allocation8 + $0x20] sm:$0xf]
    %v266 = vld [vmem:[#allocation8 + $0x24] sm:$0xf]
    %v267 = vld [vmem:[#allocation8 + $0x28] sm:$0xf]
    %v268 = vld [vmem:[#allocation8 + $0x2c] sm:$0xf]
    %v269 = vld [vmem:[#allocation8 + $0x30] sm:$0xf]
    %v270 = vld [vmem:[#allocation8 + $0x34] sm:$0xf]
    %v271 = vld [vmem:[#allocation8 + $0x38] sm:$0xf]
    %v272 = vld [vmem:[#allocation8 + $0x3c] sm:$0xf]
    %v273 = vld [vmem:[#allocation8 + $0x40] sm:$0xf]
    %v274 = vld [vmem:[#allocation8 + $0x44] sm:$0xf]
    %v275 = vld [vmem:[#allocation8 + $0x48] sm:$0xf]
    %v276 = vld [vmem:[#allocation8 + $0x4c] sm:$0xf]
    %v277 = vld [vmem:[#allocation8 + $0x50] sm:$0xf]
    %v278 = vld [vmem:[#allocation8 + $0x54] sm:$0xf]
    %v279 = vld [vmem:[#allocation8 + $0x58] sm:$0xf]
    %v280 = vld [vmem:[#allocation8 + $0x5c] sm:$0xf]
    %v281 = vld [vmem:[#allocation8 + $0x60] sm:$0xf]
    %v282 = vld [vmem:[#allocation8 + $0x64] sm:$0xf]
    %v283 = vld [vmem:[#allocation8 + $0x68] sm:$0xf]
    %v284 = vld [vmem:[#allocation8 + $0x6c] sm:$0xf]
    %v285 = vld [vmem:[#allocation8 + $0x70] sm:$0xf]
    %v286 = vld [vmem:[#allocation8 + $0x74] sm:$0xf]
    %v287 = vld [vmem:[#allocation8 + $0x78] sm:$0xf]
    %v288 = vld [vmem:[#allocation8 + $0x7c] sm:$0xf]
    %v289 = vld [vmem:[%s4] sm:$0x1]
    %v291 = vperm.slane %v289, 0
    %v325 = vunpack.c.l.b16 %v257
    %v326 = vunpack.c.l.b16 %v258
    %v327 = vunpack.c.l.b16 %v259
    %v328 = vunpack.c.l.b16 %v260
    %v329 = vunpack.c.l.b16 %v261
    %v330 = vunpack.c.l.b16 %v262
    %v331 = vunpack.c.l.b16 %v263
    %v332 = vunpack.c.l.b16 %v264
    %v333 = vunpack.c.l.b16 %v265
    %v334 = vunpack.c.l.b16 %v266
    %v335 = vunpack.c.l.b16 %v267
    %v336 = vunpack.c.l.b16 %v268
    %v337 = vunpack.c.l.b16 %v269
    %v338 = vunpack.c.l.b16 %v270
    %v339 = vunpack.c.l.b16 %v271
    %v340 = vunpack.c.l.b16 %v272
    %v341 = vunpack.c.l.b16 %v273
    %v342 = vunpack.c.l.b16 %v274
    %v343 = vunpack.c.l.b16 %v275
    %v344 = vunpack.c.l.b16 %v276
    %v345 = vunpack.c.l.b16 %v277
    %v346 = vunpack.c.l.b16 %v278
    %v347 = vunpack.c.l.b16 %v279
    %v348 = vunpack.c.l.b16 %v280
    %v349 = vunpack.c.l.b16 %v281
    %v350 = vunpack.c.l.b16 %v282
    %v351 = vunpack.c.l.b16 %v283
    %v352 = vunpack.c.l.b16 %v284
    %v353 = vunpack.c.l.b16 %v285
    %v354 = vunpack.c.l.b16 %v286
    %v355 = vunpack.c.l.b16 %v287
    %v356 = vunpack.c.l.b16 %v288
    %v357 = vpack.c.b16 %v326, %v325
    %v358 = vpack.c.b16 %v328, %v327
    %v359 = vpack.c.b16 %v330, %v329
    %v360 = vpack.c.b16 %v332, %v331
    %v361 = vpack.c.b16 %v334, %v333
    %v362 = vpack.c.b16 %v336, %v335
    %v363 = vpack.c.b16 %v338, %v337
    %v364 = vpack.c.b16 %v340, %v339
    %v365 = vpack.c.b16 %v342, %v341
    %v366 = vpack.c.b16 %v344, %v343
    %v367 = vpack.c.b16 %v346, %v345
    %v368 = vpack.c.b16 %v348, %v347
    %v369 = vpack.c.b16 %v350, %v349
    %v370 = vpack.c.b16 %v352, %v351
    %v371 = vpack.c.b16 %v354, %v353
    %v372 = vpack.c.b16 %v356, %v355
    %389 = vmatpush.bf16.msra.mxu0 %v364
    %390 = vmatpush.bf16.msra.mxu0 %v363
    %391 = vmatpush.bf16.msra.mxu0 %v362
    %392 = vmatpush.bf16.msra.mxu0 %v361
    %393 = vmatpush.bf16.msra.mxu0 %v360
    %394 = vmatpush.bf16.msra.mxu0 %v359
    %395 = vmatpush.bf16.msra.mxu0 %v358
    %396 = vmatpush.bf16.msra.mxu0 %v357
    %397 = vmatmul.bf16.gmra.mxu0 %v255
    %v398 = vpop.f32.mrf.mxu0
    %v399 = vadd.f32 %v291, %v398
    %v400 = vpop.f32.mrf.mxu0
    %401 = vdwg.mxu0
    %402 = vmatpush.bf16.msra.mxu0 %v372
    %403 = vmatpush.bf16.msra.mxu0 %v371
    %404 = vmatpush.bf16.msra.mxu0 %v370
    %405 = vmatpush.bf16.msra.mxu0 %v369
    %406 = vmatpush.bf16.msra.mxu0 %v368
    %407 = vmatpush.bf16.msra.mxu0 %v367
    %408 = vmatpush.bf16.msra.mxu0 %v366
    %409 = vmatpush.bf16.msra.mxu0 %v365
    %410 = vmatmul.bf16.gmra.mxu0 %v256
    %v411 = vpop.f32.mrf.mxu0
    %v412 = vadd.f32 %v399, %v411
    %v413 = vpop.f32.mrf.mxu0
    %414 = vdwg.mxu0
    %v415 = vmax.f32 %v412, 0.0
    %v416 = vpack.c.bf16 %v415, %v415
    %v417 = vld [vmem:[#allocation10] sm:$0xf]
    %v418 = vld [vmem:[#allocation10 + $0x4] sm:$0xf]
    %v419 = vld [vmem:[#allocation10 + $0x8] sm:$0xf]
    %v420 = vld [vmem:[#allocation10 + $0xc] sm:$0xf]
    %v421 = vld [vmem:[#allocation10 + $0x10] sm:$0xf]
    %v422 = vld [vmem:[#allocation10 + $0x14] sm:$0xf]
    %v423 = vld [vmem:[#allocation10 + $0x18] sm:$0xf]
    %v424 = vld [vmem:[#allocation10 + $0x1c] sm:$0xf]
    %v425 = vld [vmem:[#allocation10 + $0x20] sm:$0xf]
    %v426 = vld [vmem:[#allocation10 + $0x24] sm:$0xf]
    %v427 = vld [vmem:[#allocation10 + $0x28] sm:$0xf]
    %v428 = vld [vmem:[#allocation10 + $0x2c] sm:$0xf]
    %v429 = vld [vmem:[#allocation10 + $0x30] sm:$0xf]
    %v430 = vld [vmem:[#allocation10 + $0x34] sm:$0xf]
    %v431 = vld [vmem:[#allocation10 + $0x38] sm:$0xf]
    %v432 = vld [vmem:[#allocation10 + $0x3c] sm:$0xf]
    %v433 = vld [vmem:[%s6] sm:$0x1]
    %v435 = vperm.slane %v433, 0
    %v453 = vunpack.c.l.b16 %v417
    %v454 = vunpack.c.l.b16 %v418
    %v455 = vunpack.c.l.b16 %v419
    %v456 = vunpack.c.l.b16 %v420
    %v457 = vunpack.c.l.b16 %v421
    %v458 = vunpack.c.l.b16 %v422
    %v459 = vunpack.c.l.b16 %v423
    %v460 = vunpack.c.l.b16 %v424
    %v461 = vunpack.c.l.b16 %v425
    %v462 = vunpack.c.l.b16 %v426
    %v463 = vunpack.c.l.b16 %v427
    %v464 = vunpack.c.l.b16 %v428
    %v465 = vunpack.c.l.b16 %v429
    %v466 = vunpack.c.l.b16 %v430
    %v467 = vunpack.c.l.b16 %v431
    %v468 = vunpack.c.l.b16 %v432
    %v469 = vpack.c.b16 %v454, %v453
    %v470 = vpack.c.b16 %v456, %v455
    %v471 = vpack.c.b16 %v458, %v457
    %v472 = vpack.c.b16 %v460, %v459
    %v473 = vpack.c.b16 %v462, %v461
    %v474 = vpack.c.b16 %v464, %v463
    %v475 = vpack.c.b16 %v466, %v465
    %v476 = vpack.c.b16 %v468, %v467
    %485 = vmatpush.bf16.msra.mxu0 %v476
    %486 = vmatpush.bf16.msra.mxu0 %v475
    %487 = vmatpush.bf16.msra.mxu0 %v474
    %488 = vmatpush.bf16.msra.mxu0 %v473
    %489 = vmatpush.bf16.msra.mxu0 %v472
    %490 = vmatpush.bf16.msra.mxu0 %v471
    %491 = vmatpush.bf16.msra.mxu0 %v470
    %492 = vmatpush.bf16.msra.mxu0 %v469
    %493 = vmatmul.bf16.gmra.mxu0 %v416
    %v494 = vpop.f32.mrf.mxu0
    %v495 = vadd.f32 %v435, %v494
    %v496 = vpop.f32.mrf.mxu0
    %497 = vdwg.mxu0
    %v498 = vmax.f32 %v495, 0.0
    %v499 = vpack.c.bf16 %v498, %v498
    %v500 = vld [vmem:[#allocation11] sm:$0xf]
    %v501 = vld [vmem:[#allocation11 + $0x4] sm:$0xf]
    %v502 = vld [vmem:[#allocation11 + $0x8] sm:$0xf]
    %v503 = vld [vmem:[#allocation11 + $0xc] sm:$0xf]
    %v504 = vld [vmem:[#allocation11 + $0x10] sm:$0xf]
    %v505 = vld [vmem:[#allocation11 + $0x14] sm:$0xf]
    %v506 = vld [vmem:[#allocation11 + $0x18] sm:$0xf]
    %v507 = vld [vmem:[#allocation11 + $0x1c] sm:$0xf]
    %v508 = vld [vmem:[#allocation11 + $0x20] sm:$0xf]
    %v509 = vld [vmem:[#allocation11 + $0x24] sm:$0xf]
    %v510 = vld [vmem:[#allocation11 + $0x28] sm:$0xf]
    %v511 = vld [vmem:[#allocation11 + $0x2c] sm:$0xf]
    %v512 = vld [vmem:[#allocation11 + $0x30] sm:$0xf]
    %v513 = vld [vmem:[#allocation11 + $0x34] sm:$0xf]
    %v514 = vld [vmem:[#allocation11 + $0x38] sm:$0xf]
    %v515 = vld [vmem:[#allocation11 + $0x3c] sm:$0xf]
    %v516 = vld [vmem:[%s8] sm:$0x1]
    %v518 = vperm.slane %v516, 0
    %v536 = vunpack.c.l.b16 %v500
    %v537 = vunpack.c.l.b16 %v501
    %v538 = vunpack.c.l.b16 %v502
    %v539 = vunpack.c.l.b16 %v503
    %v540 = vunpack.c.l.b16 %v504
    %v541 = vunpack.c.l.b16 %v505
    %v542 = vunpack.c.l.b16 %v506
    %v543 = vunpack.c.l.b16 %v507
    %v544 = vunpack.c.l.b16 %v508
    %v545 = vunpack.c.l.b16 %v509
    %v546 = vunpack.c.l.b16 %v510
    %v547 = vunpack.c.l.b16 %v511
    %v548 = vunpack.c.l.b16 %v512
    %v549 = vunpack.c.l.b16 %v513
    %v550 = vunpack.c.l.b16 %v514
    %v551 = vunpack.c.l.b16 %v515
    %v552 = vpack.c.b16 %v537, %v536
    %v553 = vpack.c.b16 %v539, %v538
    %v554 = vpack.c.b16 %v541, %v540
    %v555 = vpack.c.b16 %v543, %v542
    %v556 = vpack.c.b16 %v545, %v544
    %v557 = vpack.c.b16 %v547, %v546
    %v558 = vpack.c.b16 %v549, %v548
    %v559 = vpack.c.b16 %v551, %v550
    %568 = vmatpush.bf16.msra.mxu0 %v559
    %569 = vmatpush.bf16.msra.mxu0 %v558
    %570 = vmatpush.bf16.msra.mxu0 %v557
    %571 = vmatpush.bf16.msra.mxu0 %v556
    %572 = vmatpush.bf16.msra.mxu0 %v555
    %573 = vmatpush.bf16.msra.mxu0 %v554
    %574 = vmatpush.bf16.msra.mxu0 %v553
    %575 = vmatpush.bf16.msra.mxu0 %v552
    %576 = vmatmul.bf16.gmra.mxu0 %v499
    %v577 = vpop.f32.mrf.mxu0
    %v578 = vadd.f32 %v518, %v577
    %v579 = vpop.f32.mrf.mxu0
    %580 = vdwg.mxu0
    %v581 = vsub.f32 0.0, %v578
    %v582 = vmul.f32 %v581, 1.442695
    %v583 = vpow.pop %v582
    %v584 = vadd.f32 %v583, 1.0
    %v585 = vrcp.pop %v584
    %v586 = vmul.f32 %v584, %v585
    %v587 = vsub.f32 1.0, %v586
    %v588 = vmul.f32 %v585, %v587
    %v589 = vadd.f32 %v585, %v588
    %vm590 = vweird.f32 %v584
    %vm591 = vweird.f32 %v585
    %vm592 = vmor %vm590, %vm591
    %v593 = vsel %vm592, %v585, %v589
    %v594 = vand.u32 2147483647, %v584
    %vm595 = vcmp.eq.f32.partialorder %v594, 8.507059e+37
    %v596 = vand.u32 %v584, 2147483648
    %v597 = vor.u32 1.1754944e-38, %v596
    %v598 = vsel %vm595, %v597, %v593
    %v599 = vmul.f32 1.0, %v598
    %v600 = vpack.c.bf16 %v599, %v599
    %601 = vst [vmem:[#allocation13] sm:$0x1] %v600
    // Predicated region
    $region62: #{tpu_custom_call.1} parent=1 // pred_check
      _
    $region63: #{tpu_custom_call.1} parent=1 // pred_check_branch
      %603 = sbr.rel (0) target = $region65
    $region64: #{tpu_custom_call.1} parent=1 // pred_region
      %605 = vsyncadd [#allocation4], 0
      %s607 = sshll.u32 [#allocation13], 4
      %s608 = int_to_ptr.vmem [resolvable:$true] %s607
      %s609 = sshll.u32 %s9, 4
      %s610 = int_to_ptr.hbm [resolvable:$true] %s609
      %612 = dma.vmem_to_hbm [thread:$0]  %s608, 16, %s610, [#allocation4]
    $region65: #{tpu_custom_call.1} parent=1 // pred_fallthru
      _
    // Predicated region
    $region66: #{tpu_custom_call.1} parent=1 // pred_check
      _
    $region67: #{tpu_custom_call.1} parent=1 // pred_check_branch
      %614 = sbr.rel (0) target = $region69
    $region68: #{tpu_custom_call.1} parent=1 // pred_region
      %616 = dma.done [#allocation4], 16
    $region69: #{tpu_custom_call.1} parent=1 // pred_fallthru
      _
    %617 = vsyncpa [#allocation3], 1
    %618 = vsyncpa [#allocation6], 1
    %619 = vsyncpa [#allocation9], 1
    %620 = vsyncpa [#allocation12], 1
    %621 = vsyncpa [#allocation4], 1

</llo_original>
